<compile_context>
chip_gen: v7x
topology: tpu7x:2x2x1
jax: 0.10.0
libtpu: 0.0.40
codegen_flags: <defaults>
</compile_context>

<pallas_src>
import functools

import jax
import jax.numpy as jnp
from jax import lax
from jax.experimental import pallas as pl
from jax.experimental.pallas import tpu as pltpu

_SUBLANE = 8
_MAX_TILE_ROWS = 1024  # ~86% of HBM roofline at 1024 rows; bigger gives <1% more


def _round_up(x: int, m: int) -> int:
    return (x + m - 1) // m * m


def _layernorm_kernel(x_ref, w_ref, b_ref, o_ref, *, eps, hidden):
    # x_ref: (tile_rows, H); w_ref / b_ref: (1, H), already f32 and resident.
    x = x_ref[...].astype(jnp.float32)
    inv_h = jnp.float32(1.0 / hidden)
    s = jnp.sum(x, axis=-1, keepdims=True)
    ss = jnp.sum(x * x, axis=-1, keepdims=True)
    mean = s * inv_h
    var = jnp.maximum(ss * inv_h - mean * mean, 0.0)  # clamp: cancellation guard
    inv = lax.rsqrt(var + jnp.float32(eps))           # EUP slot, ~free
    y = (x - mean) * inv * w_ref[...] + b_ref[...]
    o_ref[...] = y.astype(o_ref.dtype)


def _vmem_capacity_bytes() -> int:
    try:
        info = pltpu.get_tpu_info()
        cap = int(getattr(info, "vmem_capacity_bytes", 0) or 0)
        if cap > 0:
            return cap
    except Exception:
        pass
    try:
        kind = jax.devices()[0].device_kind.lower()
        if any(v in kind for v in ("v4", "v5", "v6")):
            return 128 * 1024 * 1024  # 128 MiB parts
    except Exception:
        pass
    return 64 * 1024 * 1024  # conservative (v7x per-core VMEM)


def _choose_tiling(rows, H, in_itemsize, out_itemsize, vmem_limit):
    """Pick (tile_rows, grid_len) from the *final* VMEM limit.

    Per-row VMEM footprint:
      2 * H * in_itemsize    double-buffered input block
      2 * H * out_itemsize   double-buffered output block
      2 * H * 4              in-kernel f32 temporaries (cast x, products)
    """
    if rows <= _SUBLANE:
        return rows, 1  # single full-extent block (exempt from sublane rule)

    bytes_per_row = H * (2 * in_itemsize + 2 * out_itemsize + 2 * 4)
    resident = 2 * 2 * H * 4          # (1, H) f32 weight & bias, double-buffered
    margin = 4 << 20                  # compiler scratch / DMA descriptors
    budget = max(vmem_limit - resident - margin, bytes_per_row * _SUBLANE)
    max_rows = max(_SUBLANE, (budget // bytes_per_row) // _SUBLANE * _SUBLANE)

    tile = min(_MAX_TILE_ROWS, max_rows)
    # Keep >= 2 grid steps so the "parallel" row axis can shard across both
    # v7x TensorCores (harmless on single-TC v5e / v6e).
    tile = min(tile, _round_up(pl.cdiv(rows, 2), _SUBLANE))
    tile = min(tile, _round_up(rows, _SUBLANE))
    tile = max(_SUBLANE, tile)

    grid_len = pl.cdiv(rows, tile)
    # Best effort: prefer an even grid so both v7x TCs get equal work.
    if grid_len > 1 and grid_len % 2 == 1:
        alt = max(_SUBLANE, _round_up(pl.cdiv(rows, grid_len + 1), _SUBLANE))
        if pl.cdiv(rows, alt) % 2 == 0:
            tile = alt
            grid_len = pl.cdiv(rows, tile)
    return tile, grid_len


def lnf_embedding_forward(hidden_states, weight, bias, *, eps=1e-5, tile_rows=None):
    """LayerNorm over the last dim, matching torch.nn.LayerNorm semantics."""
    H = hidden_states.shape[-1]
    lead_shape = hidden_states.shape[:-1]
    rows = 1
    for d in lead_shape:
        rows *= int(d)
    in_dtype = hidden_states.dtype
    in_itemsize = jnp.dtype(in_dtype).itemsize

    vmem_cap = _vmem_capacity_bytes()
    vmem_limit = int(vmem_cap * 3 // 4)

    if tile_rows is None:
        tile_rows, grid_len = _choose_tiling(rows, H, in_itemsize, in_itemsize, vmem_limit)
    else:
        tile_rows = int(tile_rows)
        if rows <= _SUBLANE:
            tile_rows = rows
        else:
            tile_rows = max(_SUBLANE, _round_up(min(tile_rows, rows), _SUBLANE))
        grid_len = pl.cdiv(rows, tile_rows)

    # Make sure the limit covers what the chosen tile actually needs
    # (double-buffered in/out blocks + f32 temps + resident w/b + margin).
    needed = (tile_rows * H * (4 * in_itemsize + 2 * 4)
              + 4 * H * 4 + (4 << 20))
    vmem_limit = int(min(max(vmem_limit, needed), vmem_cap))

    x2d = hidden_states.reshape(rows, H)          # free: merges leading dims
    w2d = weight.astype(jnp.float32).reshape(1, H)  # hoist cast out of kernel
    b2d = bias.astype(jnp.float32).reshape(1, H)

    kernel = functools.partial(_layernorm_kernel, eps=eps, hidden=H)

    out2d = pl.pallas_call(
        kernel,
        out_shape=jax.ShapeDtypeStruct((rows, H), in_dtype),
        grid_spec=pltpu.PrefetchScalarGridSpec(
            num_scalar_prefetch=0,
            grid=(grid_len,),
            in_specs=[
                pl.BlockSpec((tile_rows, H), lambda i: (i, 0)),
                pl.BlockSpec((1, H), lambda i: (0, 0)),
                pl.BlockSpec((1, H), lambda i: (0, 0)),
            ],
            out_specs=pl.BlockSpec((tile_rows, H), lambda i: (i, 0)),
        ),
        compiler_params=pltpu.CompilerParams(
            dimension_semantics=("parallel",),
            vmem_limit_bytes=vmem_limit,
        ),
    )(x2d, w2d, b2d)

    return out2d.reshape(*lead_shape, H)


def _reference(hidden_states, weight, bias, eps):
    x = hidden_states.astype(jnp.float32)
    mean = jnp.mean(x, axis=-1, keepdims=True)
    var = jnp.mean((x - mean) ** 2, axis=-1, keepdims=True)
    y = (x - mean) * lax.rsqrt(var + eps) * weight.astype(jnp.float32) + bias.astype(jnp.float32)
    return y.astype(hidden_states.dtype)


if __name__ == "__main__":
    key = jax.random.PRNGKey(0)
    eps = 1e-5

    # Test 1: lane-aligned hidden, rows a multiple of the sublane tile.
    k1, k2, k3, key = jax.random.split(key, 4)
    B, S, H = 2, 8, 256
    x = jax.random.normal(k1, (B, S, H), dtype=jnp.float32)
    w = 1.0 + 0.01 * jax.random.normal(k2, (H,), dtype=jnp.float32)
    b = 0.01 * jax.random.normal(k3, (H,), dtype=jnp.float32)
    out = jax.block_until_ready(lnf_embedding_forward(x, w, b, eps=eps))
    ref = _reference(x, w, b, eps)
    assert jnp.allclose(out, ref, atol=1e-4, rtol=1e-4), "mismatch (aligned case)"

    # Test 2: rows not a multiple of the tile, hidden not a multiple of 128
    # (exercises the ragged last row block and the non-128 lane block, with
    #  no wrapper-side padding or slicing).
    k1, k2, k3, key = jax.random.split(key, 4)
    B, S, H = 2, 7, 200
    x = jax.random.normal(k1, (B, S, H), dtype=jnp.float32)
    w = 1.0 + 0.01 * jax.random.normal(k2, (H,), dtype=jnp.float32)
    b = 0.01 * jax.random.normal(k3, (H,), dtype=jnp.float32)
    out = jax.block_until_ready(lnf_embedding_forward(x, w, b, eps=eps))
    ref = _reference(x, w, b, eps)
    assert jnp.allclose(out, ref, atol=1e-4, rtol=1e-4), "mismatch (ragged case)"

    # Test 3: bf16 activations (cast-to-f32 math path, bf16 store).
    k1, k2, k3, key = jax.random.split(key, 4)
    B, S, H = 2, 8, 384
    x = jax.random.normal(k1, (B, S, H), dtype=jnp.float32).astype(jnp.bfloat16)
    w = (1.0 + 0.01 * jax.random.normal(k2, (H,), dtype=jnp.float32)).astype(jnp.bfloat16)
    b = (0.01 * jax.random.normal(k3, (H,), dtype=jnp.float32)).astype(jnp.bfloat16)
    out = jax.block_until_ready(lnf_embedding_forward(x, w, b, eps=eps))
    ref = _reference(x, w, b, eps)
    assert jnp.allclose(out.astype(jnp.float32), ref.astype(jnp.float32),
                        atol=2e-2, rtol=2e-2), "mismatch (bf16 case)"

    # TODO(synk): the torch wrapper's detach()/numpy()/torch.tensor() host
    # round-trip is glue around the compiled ln_f and has no kernel equivalent.
    print("KERNEL_OK")
</pallas_src>

<mosaic_0001>
module attributes {stable_mosaic.version = 11 : i64} {
  func.func @_layernorm_kernel(%arg0: i32, %arg1: memref<8x256xf32, #tpu.memory_space<vmem>>, %arg2: memref<1x256xf32, #tpu.memory_space<vmem>>, %arg3: memref<1x256xf32, #tpu.memory_space<vmem>>, %arg4: memref<8x256xf32, #tpu.memory_space<vmem>>) attributes {dimension_semantics = [#tpu.dimension_semantics<parallel>], iteration_bounds = array<i64: 2>, scalar_prefetch = 0 : i64, scratch_operands = 0 : i64, tpu.core_type = #tpu.core_type<tc>, window_params = [{transform_indices = @transform_0, window_bounds = array<i64: 8, 256>}, {pipeline_mode = #tpu.pipeline_mode<synchronous>, transform_indices = @transform_1, window_bounds = array<i64: 1, 256>}, {pipeline_mode = #tpu.pipeline_mode<synchronous>, transform_indices = @transform_2, window_bounds = array<i64: 1, 256>}, {transform_indices = @transform_3, window_bounds = array<i64: 8, 256>}]} {
    %c0 = arith.constant 0 : index
    %c0_0 = arith.constant 0 : index
    %0 = vector.load %arg1[%c0, %c0_0] : memref<8x256xf32, #tpu.memory_space<vmem>>, vector<8x256xf32>
    %cst = arith.constant dense<0.000000e+00> : vector<8xf32>
    %1 = vector.multi_reduction <add>, %0, %cst [1] : vector<8x256xf32> to vector<8xf32>
    %2 = vector.shape_cast %1 : vector<8xf32> to vector<8x1xf32>
    %3 = arith.mulf %0, %0 : vector<8x256xf32>
    %cst_1 = arith.constant dense<0.000000e+00> : vector<8xf32>
    %4 = vector.multi_reduction <add>, %3, %cst_1 [1] : vector<8x256xf32> to vector<8xf32>
    %5 = vector.shape_cast %4 : vector<8xf32> to vector<8x1xf32>
    %cst_2 = arith.constant 3.906250e-03 : f32
    %6 = vector.broadcast %cst_2 : f32 to vector<8x1xf32>
    %7 = arith.mulf %2, %6 : vector<8x1xf32>
    %cst_3 = arith.constant 3.906250e-03 : f32
    %8 = vector.broadcast %cst_3 : f32 to vector<8x1xf32>
    %9 = arith.mulf %5, %8 : vector<8x1xf32>
    %10 = arith.mulf %7, %7 : vector<8x1xf32>
    %11 = arith.subf %9, %10 : vector<8x1xf32>
    %cst_4 = arith.constant 0.000000e+00 : f32
    %12 = vector.broadcast %cst_4 : f32 to vector<8x1xf32>
    %13 = arith.maximumf %11, %12 : vector<8x1xf32>
    %cst_5 = arith.constant 9.99999974E-6 : f32
    %14 = vector.broadcast %cst_5 : f32 to vector<8x1xf32>
    %15 = arith.addf %13, %14 : vector<8x1xf32>
    %16 = math.rsqrt %15 : vector<8x1xf32>
    %17 = vector.broadcast %7 : vector<8x1xf32> to vector<8x256xf32>
    %18 = arith.subf %0, %17 : vector<8x256xf32>
    %19 = vector.broadcast %16 : vector<8x1xf32> to vector<8x256xf32>
    %20 = arith.mulf %18, %19 : vector<8x256xf32>
    %c0_6 = arith.constant 0 : index
    %c0_7 = arith.constant 0 : index
    %21 = vector.load %arg2[%c0_6, %c0_7] : memref<1x256xf32, #tpu.memory_space<vmem>>, vector<1x256xf32>
    %22 = vector.broadcast %21 : vector<1x256xf32> to vector<8x256xf32>
    %23 = arith.mulf %20, %22 : vector<8x256xf32>
    %c0_8 = arith.constant 0 : index
    %c0_9 = arith.constant 0 : index
    %24 = vector.load %arg3[%c0_8, %c0_9] : memref<1x256xf32, #tpu.memory_space<vmem>>, vector<1x256xf32>
    %25 = vector.broadcast %24 : vector<1x256xf32> to vector<8x256xf32>
    %26 = arith.addf %23, %25 : vector<8x256xf32>
    %c0_10 = arith.constant 0 : index
    %c0_11 = arith.constant 0 : index
    %27 = vector.load %arg4[%c0_10, %c0_11] : memref<8x256xf32, #tpu.memory_space<vmem>>, vector<8x256xf32>
    tpu.vector_store %arg4[%c0_10, %c0_11], %26 {strides = array<i32>} : memref<8x256xf32, #tpu.memory_space<vmem>>, vector<8x256xf32>,
    return
  }
  func.func @transform_0(%arg0: i32) -> (i32, i32) {
    %c0_i32 = arith.constant 0 : i32
    %c0_i32_0 = arith.constant 0 : i32
    return %arg0, %c0_i32 : i32, i32
  }
  func.func @transform_1(%arg0: i32) -> (i32, i32) {
    %c0_i32 = arith.constant 0 : i32
    %c0_i32_0 = arith.constant 0 : i32
    %c0_i32_1 = arith.constant 0 : i32
    return %c0_i32, %c0_i32_0 : i32, i32
  }
  func.func @transform_2(%arg0: i32) -> (i32, i32) {
    %c0_i32 = arith.constant 0 : i32
    %c0_i32_0 = arith.constant 0 : i32
    %c0_i32_1 = arith.constant 0 : i32
    return %c0_i32, %c0_i32_0 : i32, i32
  }
  func.func @transform_3(%arg0: i32) -> (i32, i32) {
    %c0_i32 = arith.constant 0 : i32
    %c0_i32_0 = arith.constant 0 : i32
    return %arg0, %c0_i32 : i32, i32
  }
}

</mosaic_0001>

<llo_original>
// kernel: tpu_custom_call.1
$region0: #{tpu_custom_call.1}
  #allocation0 [shape = 'u32[]', space=smem, size = 0x4, offset = 0x4, fixed_abs, tag = 'smem constant byte address 0x4 - core index']
  #allocation1 [shape = 'u32[144,128]{1,0:T(1,128)}', space=vmem, size = 0x12000, scoped, tag = 'internal scratch']
  %s0 = inlined_call_operand.hbm [shape: f32[16,256], index: 0, kind: input, shape index: {}]
  %s1 = inlined_call_operand.vmem [shape: f32[1,256], index: 1, kind: input, shape index: {}]
  %s2 = inlined_call_operand.vmem [shape: f32[1,256], index: 2, kind: input, shape index: {}]
  %s3 = inlined_call_operand.hbm [shape: f32[16,256], index: 3, kind: output, shape index: {}]
  %s4 = sld [smem:[#allocation0]]
  $region49: #{tpu_custom_call.1} parent=0
    _
  %s6 = ssub.s32 1, %s4
  %s7 = scalar_select 0, %s6, %s4
  $region1: #{tpu_custom_call.1} parent=0
    #allocation2 [shape = 'u8[16384]{0}', space=vmem, size = 0x4000, scoped, tag = 'input window, operand 0']
    #allocation3 [shape = 's32[2]{0}', space=sflag, size = 0x8, scoped, tag = 'scoped memory for tpu_custom_call.1']
    #allocation4 [shape = 's32[2]{0}', space=sflag, size = 0x8, scoped, tag = 'scoped memory for tpu_custom_call.1']
    #allocation5 [shape = 'u8[16384]{0}', space=vmem, size = 0x4000, scoped, tag = 'output window, operand 0']
    %8 = vsyncpa [#allocation3], 0
    %s9 = scalar_lea.sflag [#allocation3], 1
    %10 = vsyncpa %s9, 0
    %11 = vsyncpa [#allocation4], 0
    %s12 = scalar_lea.sflag [#allocation4], 1
    %13 = vsyncpa %s12, 0
    loop: start=0, step=1, limit=4
    $region2: #{tpu_custom_call.1} parent=1 // loop_pre_header
      _
    $region3: #{tpu_custom_call.1} parent=1 // loop_header
      %s15 = sphi 0, %s19
      %p16 = scmp.ge.s32.totalorder %s15, 4
      %s25 = sphi 0, %s27
      %s28 = sphi 0, %s25
      %s29 = sphi 0, %s28
      %s45 = sphi 0, %s29
      %s49 = sphi 0, %s49
      %s51 = sphi 0, %s49
      %s52 = sphi 0, %s51
      %s66 = sphi 0, %s52
      %s70 = sphi 0, %s70
      %s72 = sphi 0, %s70
      %s73 = sphi 0, %s72
      %s87 = sphi 0, %s73
      %s93 = sphi 0, %s95
      %s96 = sphi 0, %s93
      %s97 = sphi 0, %s96
      %s113 = sphi 0, %s97
    $region4: #{tpu_custom_call.1} parent=1 // loop_header_branch
      %18 = sbr.rel (%p16) target = $region8
    $region5: #{tpu_custom_call.1} parent=1 // loop_body
      %s20 = ssub.s32 %s15, 1
      %s21 = ssub.s32 %s15, 2
      %s22 = sadd.s32 %s15, 1
      %s23 = ssub.s32 %s15, %s22
      %p24 = scmp.eq.s32.totalorder %s23, 0
      %s26 = sadd.s32 %s25, 1
      %s27 = scalar_select %p24, %s25, %s26
      %p30 = pneg %p24
      %p31 = scmp.eq.s32.totalorder %s15, 1
      %p32 = por %p30, %p31
      %p33 = scmp.ne.s32.totalorder %s25, %s28
      %p34 = scmp.eq.s32.totalorder %s15, 0
      %p35 = por %p33, %p34
      %p36 = scmp.ne.s32.totalorder %s25, %s28
      %p37 = scmp.eq.s32.totalorder %s20, 1
      %p38 = por %p36, %p37
      %p39 = scmp.ne.s32.totalorder %s28, %s29
      %p40 = scmp.eq.s32.totalorder %s20, 0
      %p41 = por %p39, %p40
      %p42 = scmp.ne.s32.totalorder %s28, %s29
      %p43 = scmp.eq.s32.totalorder %s21, 1
      %p44 = por %p42, %p43
      %p46 = scmp.ne.s32.totalorder %s29, %s45
      %p47 = scmp.eq.s32.totalorder %s21, 0
      %p48 = por %p46, %p47
      %s50 = sadd.s32 %s49, 1
      %p53 = scmp.eq.s32.totalorder %s15, 1
      %p54 = scmp.ne.s32.totalorder %s49, %s51
      %p55 = scmp.eq.s32.totalorder %s15, 0
      %p56 = por %p54, %p55
      %p57 = scmp.ne.s32.totalorder %s49, %s51
      %p58 = scmp.eq.s32.totalorder %s20, 1
      %p59 = por %p57, %p58
      %p60 = scmp.ne.s32.totalorder %s51, %s52
      %p61 = scmp.eq.s32.totalorder %s20, 0
      %p62 = por %p60, %p61
      %p63 = scmp.ne.s32.totalorder %s51, %s52
      %p64 = scmp.eq.s32.totalorder %s21, 1
      %p65 = por %p63, %p64
      %p67 = scmp.ne.s32.totalorder %s52, %s66
      %p68 = scmp.eq.s32.totalorder %s21, 0
      %p69 = por %p67, %p68
      %s71 = sadd.s32 %s70, 1
      %p74 = scmp.eq.s32.totalorder %s15, 1
      %p75 = scmp.ne.s32.totalorder %s70, %s72
      %p76 = scmp.eq.s32.totalorder %s15, 0
      %p77 = por %p75, %p76
      %p78 = scmp.ne.s32.totalorder %s70, %s72
      %p79 = scmp.eq.s32.totalorder %s20, 1
      %p80 = por %p78, %p79
      %p81 = scmp.ne.s32.totalorder %s72, %s73
      %p82 = scmp.eq.s32.totalorder %s20, 0
      %p83 = por %p81, %p82
      %p84 = scmp.ne.s32.totalorder %s72, %s73
      %p85 = scmp.eq.s32.totalorder %s21, 1
      %p86 = por %p84, %p85
      %p88 = scmp.ne.s32.totalorder %s73, %s87
      %p89 = scmp.eq.s32.totalorder %s21, 0
      %p90 = por %p88, %p89
      %s91 = ssub.s32 %s15, %s22
      %p92 = scmp.eq.s32.totalorder %s91, 0
      %s94 = sadd.s32 %s93, 1
      %s95 = scalar_select %p92, %s93, %s94
      %p98 = pneg %p92
      %p99 = scmp.eq.s32.totalorder %s15, 1
      %p100 = por %p98, %p99
      %p101 = scmp.ne.s32.totalorder %s93, %s96
      %p102 = scmp.eq.s32.totalorder %s15, 0
      %p103 = por %p101, %p102
      %p104 = scmp.ne.s32.totalorder %s93, %s96
      %p105 = scmp.eq.s32.totalorder %s20, 1
      %p106 = por %p104, %p105
      %p107 = scmp.ne.s32.totalorder %s96, %s97
      %p108 = scmp.eq.s32.totalorder %s20, 0
      %p109 = por %p107, %p108
      %p110 = scmp.ne.s32.totalorder %s96, %s97
      %p111 = scmp.eq.s32.totalorder %s21, 1
      %p112 = por %p110, %p111
      %p114 = scmp.ne.s32.totalorder %s97, %s113
      %p115 = scmp.eq.s32.totalorder %s21, 0
      %p116 = por %p114, %p115
      %p117 = scmp.le.s32.totalorder 1, %s15
      %p118 = scmp.lt.s32.totalorder %s15, 3
      %p119 = pnand %p117, %p118
      %p120 = pneg %p119
      // Predicated region
      $region9: #{tpu_custom_call.1} parent=5 // pred_check
        _
      $region10: #{tpu_custom_call.1} parent=5 // pred_check_branch
        %122 = sbr.rel (%p119) target = $region12
      $region11: #{tpu_custom_call.1} parent=5 // pred_region
        %s123 = ssub.s32 %s15, 1
        // Predicated region
        $region13: #{tpu_custom_call.1} parent=11 // pred_check
          %p124 = pneg %p62
        $region14: #{tpu_custom_call.1} parent=11 // pred_check_branch
          %126 = sbr.rel (%p124) target = $region16
        $region15: #{tpu_custom_call.1} parent=11 // pred_region
          _
        $region16: #{tpu_custom_call.1} parent=11 // pred_fallthru
          _
        // Predicated region
        $region17: #{tpu_custom_call.1} parent=11 // pred_check
          %p127 = pneg %p83
        $region18: #{tpu_custom_call.1} parent=11 // pred_check_branch
          %129 = sbr.rel (%p127) target = $region20
        $region19: #{tpu_custom_call.1} parent=11 // pred_region
          _
        $region20: #{tpu_custom_call.1} parent=11 // pred_fallthru
          _
      $region12: #{tpu_custom_call.1} parent=5 // pred_fallthru
        _
      %p130 = scmp.lt.s32.totalorder %s15, 2
      // Predicated region
      $region21: #{tpu_custom_call.1} parent=5 // pred_check
        %p131 = pneg %p130
      $region22: #{tpu_custom_call.1} parent=5 // pred_check_branch
        %133 = sbr.rel (%p131) target = $region24
      $region23: #{tpu_custom_call.1} parent=5 // pred_region
        // Predicated region
        $region25: #{tpu_custom_call.1} parent=23 // pred_check
          %p134 = pneg %p35
        $region26: #{tpu_custom_call.1} parent=23 // pred_check_branch
          %136 = sbr.rel (%p134) target = $region28
        $region27: #{tpu_custom_call.1} parent=23 // pred_region
          %s137 = sand.u32 %s25, 1
          %s138 = scalar_lea.sflag [#allocation3], %s137
          %s139 = sand.u32 %s25, 1
          %s140 = smul.addr %s139, 16
          %s141 = scalar_lea.vmem [#allocation2], %s140
          %s143 = ssub.s32 256, 256
          %144 = vsyncadd %s138, %s143
          %s145 = smul.addr %s15, 2
          %s146 = smul.addr %s145, 128
          %s147 = scalar_lea.hbm %s0, %s146
          %s149 = sshll.u32 %s141, 4
          %s150 = int_to_ptr.vmem [resolvable:$true] %s149
          %152 = dma.hbm_to_vmem [thread:$0]  %s147, 256, %s150, %s138
        $region28: #{tpu_custom_call.1} parent=23 // pred_fallthru
          _
      $region24: #{tpu_custom_call.1} parent=5 // pred_fallthru
        _
      %p153 = scmp.le.s32.totalorder 1, %s15
      %p154 = scmp.lt.s32.totalorder %s15, 3
      %p155 = pnand %p153, %p154
      %p156 = pneg %p155
      // Predicated region
      $region29: #{tpu_custom_call.1} parent=5 // pred_check
        _
      $region30: #{tpu_custom_call.1} parent=5 // pred_check_branch
        %158 = sbr.rel (%p155) target = $region32
      $region31: #{tpu_custom_call.1} parent=5 // pred_region
        %s159 = ssub.s32 %s15, 1
        %s160 = sand.u32 %s28, 1
        %s161 = scalar_lea.sflag [#allocation3], %s160
        %s162 = sand.u32 %s28, 1
        %s163 = smul.addr %s162, 16
        %s164 = scalar_lea.vmem [#allocation2], %s163
        // Predicated region
        $region33: #{tpu_custom_call.1} parent=31 // pred_check
          %p165 = pneg %p41
        $region34: #{tpu_custom_call.1} parent=31 // pred_check_branch
          %167 = sbr.rel (%p165) target = $region36
        $region35: #{tpu_custom_call.1} parent=31 // pred_region
          %168 = dma.done %s161, 256
        $region36: #{tpu_custom_call.1} parent=31 // pred_fallthru
          _
        %s169 = sand.u32 %s28, 1
        %s170 = scalar_lea.sflag [#allocation3], %s169
        %s171 = sand.u32 %s28, 1
        %s172 = smul.addr %s171, 16
        %s173 = scalar_lea.vmem [#allocation2], %s172
        %p174 = pneg %p41
        %p175 = pneg %p38
        %p176 = pneg %p62
        %p177 = pneg %p59
        %p178 = pneg %p83
        %p179 = pneg %p80
        %p180 = pneg %p109
        %p181 = pneg %p106
        %s182 = sand.u32 %s96, 1
        %s183 = scalar_lea.sflag [#allocation4], %s182
        %s184 = sand.u32 %s96, 1
        %s185 = smul.addr %s184, 16
        %s186 = scalar_lea.vmem [#allocation5], %s185
        %v187 = vld [vmem:[%s164] sm:$0xff]
        %v188 = vld [vmem:[%s164 + $0x8] sm:$0xff]
        %v189 = vadd.f32 %v187, %v188
        %190 = vadd.xlane.f32.xlu0 %v189
        %v191 = vpop.xlane.xlu0 %190
        %v192 = vmul.f32 %v187, %v187
        %v193 = vmul.f32 %v188, %v188
        %v194 = vadd.f32 %v192, %v193
        %195 = vadd.xlane.f32.xlu0 %v194
        %v196 = vpop.xlane.xlu0 %195
        %v197 = vmul.f32 %v191, 0.00390625
        %v198 = vmul.f32 %v196, 0.00390625
        %v199 = vmul.f32 %v197, %v197
        %v200 = vsub.f32 %v198, %v199
        %v201 = vmax.f32 %v200, 0.0
        %v202 = vadd.f32 %v201, 1e-05
        %v203 = vrsqrt.pop %v202
        %v204 = vsub.f32 %v187, %v197
        %v205 = vsub.f32 %v188, %v197
        %v206 = vmul.f32 %v204, %v203
        %v207 = vmul.f32 %v205, %v203
        %v208 = vld [vmem:[%s1] sm:$0x3]
        %v210 = vlaneseq
        %v211 = vshrl.u32 %v210, 7
        %v212 = vsub.s32 0, %v211
        %v213 = vrot.slane %v208, %v212
        %v214 = vlaneseq
        %v215 = vshrl.u32 %v214, 7
        %v216 = vsub.s32 1, %v215
        %v217 = vrot.slane %v208, %v216
        %v220 = vmul.f32 %v206, %v213
        %v221 = vmul.f32 %v207, %v217
        %v222 = vld [vmem:[%s2] sm:$0x3]
        %v224 = vlaneseq
        %v225 = vshrl.u32 %v224, 7
        %v226 = vsub.s32 0, %v225
        %v227 = vrot.slane %v222, %v226
        %v228 = vlaneseq
        %v229 = vshrl.u32 %v228, 7
        %v230 = vsub.s32 1, %v229
        %v231 = vrot.slane %v222, %v230
        %v234 = vadd.f32 %v220, %v227
        %v235 = vadd.f32 %v221, %v231
        %236 = vst [vmem:[%s186] sm:$0xff] %v234
        %237 = vst [vmem:[%s186 + $0x8] sm:$0xff] %v235
        %s238 = sand.u32 %s96, 1
        %s239 = scalar_lea.sflag [#allocation4], %s238
        %s240 = sand.u32 %s96, 1
        %s241 = smul.addr %s240, 16
        %s242 = scalar_lea.vmem [#allocation5], %s241
        // Predicated region
        $region37: #{tpu_custom_call.1} parent=31 // pred_check
          %p243 = pneg %p106
        $region38: #{tpu_custom_call.1} parent=31 // pred_check_branch
          %245 = sbr.rel (%p243) target = $region40
        $region39: #{tpu_custom_call.1} parent=31 // pred_region
          %s247 = ssub.s32 256, 256
          %248 = vsyncadd %s239, %s247
          %s249 = smul.addr %s20, 2
          %s250 = smul.addr %s249, 128
          %s251 = scalar_lea.hbm %s3, %s250
          %s253 = sshll.u32 %s242, 4
          %s254 = int_to_ptr.vmem [resolvable:$true] %s253
          %256 = dma.vmem_to_hbm [thread:$0]  %s254, 256, %s251, %s239
        $region40: #{tpu_custom_call.1} parent=31 // pred_fallthru
          _
      $region32: #{tpu_custom_call.1} parent=5 // pred_fallthru
        _
      %p257 = scmp.le.s32.totalorder 2, %s15
      // Predicated region
      $region41: #{tpu_custom_call.1} parent=5 // pred_check
        %p258 = pneg %p257
      $region42: #{tpu_custom_call.1} parent=5 // pred_check_branch
        %260 = sbr.rel (%p258) target = $region44
      $region43: #{tpu_custom_call.1} parent=5 // pred_region
        %s261 = ssub.s32 %s15, 2
        // Predicated region
        $region45: #{tpu_custom_call.1} parent=43 // pred_check
          %p262 = pneg %p112
        $region46: #{tpu_custom_call.1} parent=43 // pred_check_branch
          %264 = sbr.rel (%p262) target = $region48
        $region47: #{tpu_custom_call.1} parent=43 // pred_region
          %s265 = sand.u32 %s97, 1
          %s266 = scalar_lea.sflag [#allocation4], %s265
          %s267 = sand.u32 %s97, 1
          %s268 = smul.addr %s267, 16
          %s269 = scalar_lea.vmem [#allocation5], %s268
          %270 = dma.done %s266, 256
        $region48: #{tpu_custom_call.1} parent=43 // pred_fallthru
          _
      $region44: #{tpu_custom_call.1} parent=5 // pred_fallthru
        _
    $region6: #{tpu_custom_call.1} parent=1 // loop_footer
      %s19 = sadd.s32 1, %s15
    $region7: #{tpu_custom_call.1} parent=1 // loop_footer_branch
      %14 = sbr.rel target = $region3
    $region8: #{tpu_custom_call.1} parent=1 // loop_exit
      _
    %271 = vsyncpa [#allocation3], 1
    %s272 = scalar_lea.sflag [#allocation3], 1
    %273 = vsyncpa %s272, 1
    %274 = vsyncpa [#allocation4], 1
    %s275 = scalar_lea.sflag [#allocation4], 1
    %276 = vsyncpa %s275, 1

</llo_original>
